<compile_context>
chip_gen: v5e
topology: v5e:2x2
jax: 0.10.0
libtpu: 0.0.40
codegen_flags: <defaults>
</compile_context>

<pallas_src>
import functools

import jax
import jax.numpy as jnp
from jax import lax
from jax.experimental import pallas as pl
from jax.experimental.pallas import tpu as pltpu

IN_FEATURES = 1
HIDDEN = 15
OUT_FEATURES = 1
H_PAD = 128          # hidden features padded to a full lane group
BN_EPS = 1e-5


def _round_up(x, m):
    return ((x + m - 1) // m) * m


# --------------------------------------------------------------------------
# Phase 1: per-tile h = ReLU(x*w1 + b1); accumulate per-feature sum / sumsq.
# --------------------------------------------------------------------------
def _stats_kernel(x_ref, w1_ref, b1_ref, stats_ref, *, tile_b, batch):
    i = pl.program_id(0)

    @pl.when(i == 0)
    def _():
        stats_ref[...] = jnp.zeros_like(stats_ref)

    x = x_ref[...]                                            # (TB, 1)
    h = jnp.maximum(x * w1_ref[...] + b1_ref[...], 0.0)       # (TB, 128)

    # Mask batch-padding rows so they do not pollute the BN statistics.
    row = i * tile_b + lax.broadcasted_iota(jnp.int32, (tile_b, 1), 0)
    h = jnp.where(row < batch, h, 0.0)

    s = jnp.sum(h, axis=0, keepdims=True)                     # (1, 128)
    sq = jnp.sum(h * h, axis=0, keepdims=True)                # (1, 128)
    upd = jnp.concatenate(
        [s, sq, jnp.zeros((6, H_PAD), jnp.float32)], axis=0)  # (8, 128)
    stats_ref[...] += upd                                     # resident accumulator


# --------------------------------------------------------------------------
# Phase 2: per-tile BN (using global stats) + Linear(15, 1).
# --------------------------------------------------------------------------
def _apply_kernel(x_ref, w1_ref, b1_ref, w2_ref, b2_ref, stats_ref, o_ref,
                  *, batch):
    x = x_ref[...]                                            # (TB, 1)
    h = jnp.maximum(x * w1_ref[...] + b1_ref[...], 0.0)       # (TB, 128)

    inv_n = jnp.float32(1.0 / batch)
    mean = stats_ref[0:1, :] * inv_n                          # (1, 128)
    var = jnp.maximum(stats_ref[1:2, :] * inv_n - mean * mean, 0.0)  # biased
    inv_std = lax.rsqrt(var + jnp.float32(BN_EPS))            # (1, 128)

    hn = (h - mean) * inv_std                                 # (TB, 128)
    # Linear(15, 1): padded lanes have zero weight -> contribute nothing.
    o_ref[...] = jnp.sum(hn * w2_ref[...], axis=1, keepdims=True) + b2_ref[...]


# --------------------------------------------------------------------------
# Wrapper
# --------------------------------------------------------------------------
def para_15_forward(x, w1, b1, w2, b2, *, tile_b=512):
    """Forward pass of PARA_15.

    x:  (B, 1) float32
    w1: (15, 1), b1: (15,)   -- nn.Linear(1, 15) params (PyTorch layout)
    w2: (1, 15), b2: (1,)    -- nn.Linear(15, 1) params (PyTorch layout)
    Returns: (B, 1) float32
    """
    B = x.shape[0]
    x2 = x.reshape(B, IN_FEATURES).astype(jnp.float32)

    # Batch tiling: TB is a multiple of 8; B padded to a multiple of TB.
    tb = min(tile_b, _round_up(B, 8))
    b_pad = _round_up(B, tb)
    if b_pad != B:
        x2 = jnp.pad(x2, ((0, b_pad - B), (0, 0)))
    n_tiles = b_pad // tb

    # Pad the 15 hidden features to 128 lanes (zeros -> no contribution).
    w1_row = jnp.zeros((1, H_PAD), jnp.float32).at[0, :HIDDEN].set(
        w1.reshape(HIDDEN).astype(jnp.float32))
    b1_row = jnp.zeros((1, H_PAD), jnp.float32).at[0, :HIDDEN].set(
        b1.reshape(HIDDEN).astype(jnp.float32))
    w2_row = jnp.zeros((1, H_PAD), jnp.float32).at[0, :HIDDEN].set(
        w2.reshape(HIDDEN).astype(jnp.float32))
    b2_11 = b2.reshape(1, 1).astype(jnp.float32)

    resident = lambda i: (0, 0)   # stays in VMEM across the batch grid
    tiled = lambda i: (i, 0)

    # ---- phase 1: cross-tile BN statistics (per-feature sum / sumsq) ----
    stats = pl.pallas_call(
        functools.partial(_stats_kernel, tile_b=tb, batch=B),
        out_shape=jax.ShapeDtypeStruct((8, H_PAD), jnp.float32),
        grid=(n_tiles,),
        in_specs=[
            pl.BlockSpec((tb, IN_FEATURES), tiled),
            pl.BlockSpec((1, H_PAD), resident),
            pl.BlockSpec((1, H_PAD), resident),
        ],
        out_specs=pl.BlockSpec((8, H_PAD), resident),
        compiler_params=pltpu.CompilerParams(
            dimension_semantics=("arbitrary",)),   # sequential accumulator
    )(x2, w1_row, b1_row)

    # ---- phase 2: BN + Linear(15, 1), independent per batch tile ----
    out = pl.pallas_call(
        functools.partial(_apply_kernel, batch=B),
        out_shape=jax.ShapeDtypeStruct((b_pad, OUT_FEATURES), jnp.float32),
        grid=(n_tiles,),
        in_specs=[
            pl.BlockSpec((tb, IN_FEATURES), tiled),
            pl.BlockSpec((1, H_PAD), resident),
            pl.BlockSpec((1, H_PAD), resident),
            pl.BlockSpec((1, H_PAD), resident),
            pl.BlockSpec((1, 1), resident),
            pl.BlockSpec((8, H_PAD), resident),
        ],
        out_specs=pl.BlockSpec((tb, OUT_FEATURES), tiled),
        compiler_params=pltpu.CompilerParams(
            dimension_semantics=("parallel",)),    # megacore split on v7x
    )(x2, w1_row, b1_row, w2_row, b2_11, stats)

    return out[:B]


def para_15_reference(x, w1, b1, w2, b2):
    """Pure-JAX reference matching the PyTorch module in training mode."""
    h = jnp.maximum(x @ w1.T + b1, 0.0)                       # (B, 15)
    mean = jnp.mean(h, axis=0, keepdims=True)
    var = jnp.mean((h - mean) ** 2, axis=0, keepdims=True)    # biased variance
    hn = (h - mean) * lax.rsqrt(var + jnp.float32(BN_EPS))
    return hn @ w2.T + b2


def init_params(key):
    """Deterministic init mirroring nn.Linear defaults (U(-1/sqrt(fan_in), .))."""
    k1, k2, k3, k4 = jax.random.split(key, 4)
    bound1 = 1.0 / (IN_FEATURES ** 0.5)
    bound2 = 1.0 / (HIDDEN ** 0.5)
    w1 = jax.random.uniform(k1, (HIDDEN, IN_FEATURES), jnp.float32, -bound1, bound1)
    b1 = jax.random.uniform(k2, (HIDDEN,), jnp.float32, -bound1, bound1)
    w2 = jax.random.uniform(k3, (OUT_FEATURES, HIDDEN), jnp.float32, -bound2, bound2)
    b2 = jax.random.uniform(k4, (OUT_FEATURES,), jnp.float32, -bound2, bound2)
    return w1, b1, w2, b2


if __name__ == "__main__":
    key = jax.random.PRNGKey(0)
    k_x, k_p = jax.random.split(key)

    B = 10  # >= 2 required for training-mode BatchNorm; not a multiple of 8
    x = jax.random.normal(k_x, (B, IN_FEATURES), jnp.float32)
    w1, b1, w2, b2 = init_params(k_p)

    # tile_b=8 -> 2 batch tiles: exercises cross-tile stat accumulation and
    # the padded-row masking path (rows 10..15 are padding).
    out = para_15_forward(x, w1, b1, w2, b2, tile_b=8)
    out = jax.block_until_ready(out)

    assert out.shape == (B, OUT_FEATURES)
    assert bool(jnp.all(jnp.isfinite(out)))

    ref = para_15_reference(x, w1, b1, w2, b2)
    assert bool(jnp.allclose(out, ref, atol=1e-4, rtol=1e-4))

    print("KERNEL_OK")
</pallas_src>

<mosaic_0001>
module attributes {stable_mosaic.version = 11 : i64} {
  func.func @_stats_kernel(%arg0: i32, %arg1: memref<8x1xf32, #tpu.memory_space<vmem>>, %arg2: memref<1x128xf32, #tpu.memory_space<vmem>>, %arg3: memref<1x128xf32, #tpu.memory_space<vmem>>, %arg4: memref<8x128xf32, #tpu.memory_space<vmem>>) attributes {dimension_semantics = [#tpu.dimension_semantics<arbitrary>], iteration_bounds = array<i64: 2>, scalar_prefetch = 0 : i64, scratch_operands = 0 : i64, tpu.core_type = #tpu.core_type<tc>, window_params = [{transform_indices = @transform_0, window_bounds = array<i64: 8, 1>}, {pipeline_mode = #tpu.pipeline_mode<synchronous>, transform_indices = @transform_1, window_bounds = array<i64: 1, 128>}, {pipeline_mode = #tpu.pipeline_mode<synchronous>, transform_indices = @transform_2, window_bounds = array<i64: 1, 128>}, {pipeline_mode = #tpu.pipeline_mode<synchronous>, transform_indices = @transform_3, window_bounds = array<i64: 8, 128>}]} {
    %c0_i32 = arith.constant 0 : i32
    %0 = arith.cmpi eq, %arg0, %c0_i32 : i32
    %1 = arith.extui %0 : i1 to i32
    %c0_i32_0 = arith.constant 0 : i32
    %2 = arith.cmpi ne, %1, %c0_i32_0 : i32
    scf.if %2 {
      %cst_14 = arith.constant 0.000000e+00 : f32
      %33 = vector.broadcast %cst_14 : f32 to vector<8x128xf32>
      %c0_15 = arith.constant 0 : index
      %c0_16 = arith.constant 0 : index
      %34 = vector.load %arg4[%c0_15, %c0_16] : memref<8x128xf32, #tpu.memory_space<vmem>>, vector<8x128xf32>
      tpu.vector_store %arg4[%c0_15, %c0_16], %33 {strides = array<i32>} : memref<8x128xf32, #tpu.memory_space<vmem>>, vector<8x128xf32>,
    } else {
    }
    %c0 = arith.constant 0 : index
    %c0_1 = arith.constant 0 : index
    %3 = vector.load %arg1[%c0, %c0_1] : memref<8x1xf32, #tpu.memory_space<vmem>>, vector<8x1xf32>
    %c0_2 = arith.constant 0 : index
    %c0_3 = arith.constant 0 : index
    %4 = vector.load %arg2[%c0_2, %c0_3] : memref<1x128xf32, #tpu.memory_space<vmem>>, vector<1x128xf32>
    %5 = vector.broadcast %3 : vector<8x1xf32> to vector<8x128xf32>
    %6 = vector.broadcast %4 : vector<1x128xf32> to vector<8x128xf32>
    %7 = arith.mulf %5, %6 : vector<8x128xf32>
    %c0_4 = arith.constant 0 : index
    %c0_5 = arith.constant 0 : index
    %8 = vector.load %arg3[%c0_4, %c0_5] : memref<1x128xf32, #tpu.memory_space<vmem>>, vector<1x128xf32>
    %9 = vector.broadcast %8 : vector<1x128xf32> to vector<8x128xf32>
    %10 = arith.addf %7, %9 : vector<8x128xf32>
    %cst = arith.constant 0.000000e+00 : f32
    %11 = vector.broadcast %cst : f32 to vector<8x128xf32>
    %12 = arith.maximumf %10, %11 : vector<8x128xf32>
    %c8_i32 = arith.constant 8 : i32
    %13 = arith.muli %arg0, %c8_i32 : i32
    %14 = tpu.iota {dimensions = array<i32: 0>} : vector<8x1xi32>
    %15 = vector.broadcast %13 : i32 to vector<8x1xi32>
    %16 = arith.addi %15, %14 : vector<8x1xi32>
    %c10_i32 = arith.constant 10 : i32
    %17 = vector.broadcast %c10_i32 : i32 to vector<8x1xi32>
    %18 = arith.cmpi slt, %16, %17 : vector<8x1xi32>
    %cst_6 = arith.constant 0.000000e+00 : f32
    %19 = vector.shape_cast %18 : vector<8x1xi1> to vector<8x1xi1>
    %20 = vector.broadcast %19 : vector<8x1xi1> to vector<8x128xi1>
    %21 = vector.broadcast %cst_6 : f32 to vector<8x128xf32>
    %22 = arith.select %20, %12, %21 : vector<8x128xi1>, vector<8x128xf32>
    %cst_7 = arith.constant dense<0.000000e+00> : vector<128xf32>
    %23 = vector.multi_reduction <add>, %22, %cst_7 [0] : vector<8x128xf32> to vector<128xf32>
    %24 = vector.shape_cast %23 : vector<128xf32> to vector<1x128xf32>
    %25 = arith.mulf %22, %22 : vector<8x128xf32>
    %cst_8 = arith.constant dense<0.000000e+00> : vector<128xf32>
    %26 = vector.multi_reduction <add>, %25, %cst_8 [0] : vector<8x128xf32> to vector<128xf32>
    %27 = vector.shape_cast %26 : vector<128xf32> to vector<1x128xf32>
    %cst_9 = arith.constant 0.000000e+00 : f32
    %28 = vector.broadcast %cst_9 : f32 to vector<6x128xf32>
    %29 = tpu.concatenate %24, %27, %28 in 0 : vector<1x128xf32>, vector<1x128xf32>, vector<6x128xf32> -> vector<8x128xf32>
    %c0_10 = arith.constant 0 : index
    %c0_11 = arith.constant 0 : index
    %30 = vector.load %arg4[%c0_10, %c0_11] : memref<8x128xf32, #tpu.memory_space<vmem>>, vector<8x128xf32>
    %31 = arith.addf %30, %29 : vector<8x128xf32>
    %c0_12 = arith.constant 0 : index
    %c0_13 = arith.constant 0 : index
    %32 = vector.load %arg4[%c0_12, %c0_13] : memref<8x128xf32, #tpu.memory_space<vmem>>, vector<8x128xf32>
    tpu.vector_store %arg4[%c0_12, %c0_13], %31 {strides = array<i32>} : memref<8x128xf32, #tpu.memory_space<vmem>>, vector<8x128xf32>,
    return
  }
  func.func @transform_0(%arg0: i32) -> (i32, i32) {
    %c0_i32 = arith.constant 0 : i32
    %c0_i32_0 = arith.constant 0 : i32
    return %arg0, %c0_i32 : i32, i32
  }
  func.func @transform_1(%arg0: i32) -> (i32, i32) {
    %c0_i32 = arith.constant 0 : i32
    %c0_i32_0 = arith.constant 0 : i32
    %c0_i32_1 = arith.constant 0 : i32
    return %c0_i32, %c0_i32_0 : i32, i32
  }
  func.func @transform_2(%arg0: i32) -> (i32, i32) {
    %c0_i32 = arith.constant 0 : i32
    %c0_i32_0 = arith.constant 0 : i32
    %c0_i32_1 = arith.constant 0 : i32
    return %c0_i32, %c0_i32_0 : i32, i32
  }
  func.func @transform_3(%arg0: i32) -> (i32, i32) {
    %c0_i32 = arith.constant 0 : i32
    %c0_i32_0 = arith.constant 0 : i32
    %c0_i32_1 = arith.constant 0 : i32
    return %c0_i32, %c0_i32_0 : i32, i32
  }
}

</mosaic_0001>

<llo_original>
// kernel: tpu_custom_call.1
$region0: #{tpu_custom_call.1}
  #allocation0 [shape = 'u32[]', space=smem, size = 0x4, offset = 0x4, fixed_abs, tag = 'smem constant byte address 0x4 - core index']
  #allocation1 [shape = 'u32[72,128]{1,0:T(1,128)}', space=vmem, size = 0x9000, scoped, tag = 'internal scratch']
  %s0 = inlined_call_operand.vmem [shape: f32[16,1], index: 0, kind: input, shape index: {}]
  %s1 = inlined_call_operand.vmem [shape: f32[1,128], index: 1, kind: input, shape index: {}]
  %s2 = inlined_call_operand.vmem [shape: f32[1,128], index: 2, kind: input, shape index: {}]
  %s3 = inlined_call_operand.hbm [shape: f32[8,128], index: 3, kind: output, shape index: {}]
  %s4 = sld [smem:[#allocation0]]
  $region49: #{tpu_custom_call.1} parent=0
    _
  %s6 = ssub.s32 1, %s4
  %s7 = scalar_select 0, %s6, %s4
  $region1: #{tpu_custom_call.1} parent=0
    #allocation2 [shape = 'u8[4096]{0}', space=vmem, size = 0x1000, scoped, tag = 'output window, operand 0, single buffered']
    #allocation3 [shape = 's32[2]{0}', space=sflag, size = 0x8, scoped, tag = 'scoped memory for tpu_custom_call.1']
    %8 = vsyncpa [#allocation3], 0
    loop: start=0, step=1, limit=4
    $region2: #{tpu_custom_call.1} parent=1 // loop_pre_header
      _
    $region3: #{tpu_custom_call.1} parent=1 // loop_header
      %s10 = sphi 0, %s14
      %p11 = scmp.ge.s32.totalorder %s10, 4
      %s20 = sphi 0, %s22
      %s23 = sphi 0, %s20
      %s24 = sphi 0, %s23
      %s40 = sphi 0, %s24
      %s44 = sphi 0, %s44
      %s46 = sphi 0, %s44
      %s47 = sphi 0, %s46
      %s61 = sphi 0, %s47
      %s65 = sphi 0, %s65
      %s67 = sphi 0, %s65
      %s68 = sphi 0, %s67
      %s82 = sphi 0, %s68
      %s86 = sphi 0, %s86
      %s88 = sphi 0, %s86
      %s89 = sphi 0, %s88
      %s103 = sphi 0, %s89
    $region4: #{tpu_custom_call.1} parent=1 // loop_header_branch
      %13 = sbr.rel (%p11) target = $region8
    $region5: #{tpu_custom_call.1} parent=1 // loop_body
      %s15 = ssub.s32 %s10, 1
      %s16 = ssub.s32 %s10, 2
      %s17 = sadd.s32 %s10, 1
      %s18 = ssub.s32 %s10, %s17
      %p19 = scmp.eq.s32.totalorder %s18, 0
      %s21 = sadd.s32 %s20, 1
      %s22 = scalar_select %p19, %s20, %s21
      %p25 = pneg %p19
      %p26 = scmp.eq.s32.totalorder %s10, 1
      %p27 = por %p25, %p26
      %p28 = scmp.ne.s32.totalorder %s20, %s23
      %p29 = scmp.eq.s32.totalorder %s10, 0
      %p30 = por %p28, %p29
      %p31 = scmp.ne.s32.totalorder %s20, %s23
      %p32 = scmp.eq.s32.totalorder %s15, 1
      %p33 = por %p31, %p32
      %p34 = scmp.ne.s32.totalorder %s23, %s24
      %p35 = scmp.eq.s32.totalorder %s15, 0
      %p36 = por %p34, %p35
      %p37 = scmp.ne.s32.totalorder %s23, %s24
      %p38 = scmp.eq.s32.totalorder %s16, 1
      %p39 = por %p37, %p38
      %p41 = scmp.ne.s32.totalorder %s24, %s40
      %p42 = scmp.eq.s32.totalorder %s16, 0
      %p43 = por %p41, %p42
      %s45 = sadd.s32 %s44, 1
      %p48 = scmp.eq.s32.totalorder %s10, 1
      %p49 = scmp.ne.s32.totalorder %s44, %s46
      %p50 = scmp.eq.s32.totalorder %s10, 0
      %p51 = por %p49, %p50
      %p52 = scmp.ne.s32.totalorder %s44, %s46
      %p53 = scmp.eq.s32.totalorder %s15, 1
      %p54 = por %p52, %p53
      %p55 = scmp.ne.s32.totalorder %s46, %s47
      %p56 = scmp.eq.s32.totalorder %s15, 0
      %p57 = por %p55, %p56
      %p58 = scmp.ne.s32.totalorder %s46, %s47
      %p59 = scmp.eq.s32.totalorder %s16, 1
      %p60 = por %p58, %p59
      %p62 = scmp.ne.s32.totalorder %s47, %s61
      %p63 = scmp.eq.s32.totalorder %s16, 0
      %p64 = por %p62, %p63
      %s66 = sadd.s32 %s65, 1
      %p69 = scmp.eq.s32.totalorder %s10, 1
      %p70 = scmp.ne.s32.totalorder %s65, %s67
      %p71 = scmp.eq.s32.totalorder %s10, 0
      %p72 = por %p70, %p71
      %p73 = scmp.ne.s32.totalorder %s65, %s67
      %p74 = scmp.eq.s32.totalorder %s15, 1
      %p75 = por %p73, %p74
      %p76 = scmp.ne.s32.totalorder %s67, %s68
      %p77 = scmp.eq.s32.totalorder %s15, 0
      %p78 = por %p76, %p77
      %p79 = scmp.ne.s32.totalorder %s67, %s68
      %p80 = scmp.eq.s32.totalorder %s16, 1
      %p81 = por %p79, %p80
      %p83 = scmp.ne.s32.totalorder %s68, %s82
      %p84 = scmp.eq.s32.totalorder %s16, 0
      %p85 = por %p83, %p84
      %s87 = sadd.s32 %s86, 1
      %p90 = scmp.eq.s32.totalorder %s10, 1
      %p91 = scmp.ne.s32.totalorder %s86, %s88
      %p92 = scmp.eq.s32.totalorder %s10, 0
      %p93 = por %p91, %p92
      %p94 = scmp.ne.s32.totalorder %s86, %s88
      %p95 = scmp.eq.s32.totalorder %s15, 1
      %p96 = por %p94, %p95
      %p97 = scmp.ne.s32.totalorder %s88, %s89
      %p98 = scmp.eq.s32.totalorder %s15, 0
      %p99 = por %p97, %p98
      %p100 = scmp.ne.s32.totalorder %s88, %s89
      %p101 = scmp.eq.s32.totalorder %s16, 1
      %p102 = por %p100, %p101
      %p104 = scmp.ne.s32.totalorder %s89, %s103
      %p105 = scmp.eq.s32.totalorder %s16, 0
      %p106 = por %p104, %p105
      %p107 = scmp.le.s32.totalorder 1, %s10
      %p108 = scmp.lt.s32.totalorder %s10, 3
      %p109 = pnand %p107, %p108
      %p110 = pneg %p109
      // Predicated region
      $region9: #{tpu_custom_call.1} parent=5 // pred_check
        _
      $region10: #{tpu_custom_call.1} parent=5 // pred_check_branch
        %112 = sbr.rel (%p109) target = $region12
      $region11: #{tpu_custom_call.1} parent=5 // pred_region
        %s113 = ssub.s32 %s10, 1
        // Predicated region
        $region13: #{tpu_custom_call.1} parent=11 // pred_check
          %p114 = pneg %p57
        $region14: #{tpu_custom_call.1} parent=11 // pred_check_branch
          %116 = sbr.rel (%p114) target = $region16
        $region15: #{tpu_custom_call.1} parent=11 // pred_region
          _
        $region16: #{tpu_custom_call.1} parent=11 // pred_fallthru
          _
        // Predicated region
        $region17: #{tpu_custom_call.1} parent=11 // pred_check
          %p117 = pneg %p78
        $region18: #{tpu_custom_call.1} parent=11 // pred_check_branch
          %119 = sbr.rel (%p117) target = $region20
        $region19: #{tpu_custom_call.1} parent=11 // pred_region
          _
        $region20: #{tpu_custom_call.1} parent=11 // pred_fallthru
          _
      $region12: #{tpu_custom_call.1} parent=5 // pred_fallthru
        _
      %p120 = scmp.lt.s32.totalorder %s10, 2
      // Predicated region
      $region21: #{tpu_custom_call.1} parent=5 // pred_check
        %p121 = pneg %p120
      $region22: #{tpu_custom_call.1} parent=5 // pred_check_branch
        %123 = sbr.rel (%p121) target = $region24
      $region23: #{tpu_custom_call.1} parent=5 // pred_region
        // Predicated region
        $region25: #{tpu_custom_call.1} parent=23 // pred_check
          %p124 = pneg %p30
        $region26: #{tpu_custom_call.1} parent=23 // pred_check_branch
          %126 = sbr.rel (%p124) target = $region28
        $region27: #{tpu_custom_call.1} parent=23 // pred_region
          %p127 = scmp.lt.s32.totalorder %s10, 1
          %s128 = scalar_select %p127, %s10, 1
          %s129 = smul.addr %s128, 8
          %s130 = scalar_lea.vmem %s0, %s129
        $region28: #{tpu_custom_call.1} parent=23 // pred_fallthru
          _
      $region24: #{tpu_custom_call.1} parent=5 // pred_fallthru
        _
      %p131 = scmp.le.s32.totalorder 1, %s10
      %p132 = scmp.lt.s32.totalorder %s10, 3
      %p133 = pnand %p131, %p132
      %p134 = pneg %p133
      // Predicated region
      $region29: #{tpu_custom_call.1} parent=5 // pred_check
        _
      $region30: #{tpu_custom_call.1} parent=5 // pred_check_branch
        %136 = sbr.rel (%p133) target = $region32
      $region31: #{tpu_custom_call.1} parent=5 // pred_region
        %s137 = ssub.s32 %s10, 1
        %p138 = scmp.lt.s32.totalorder %s15, 1
        %s139 = scalar_select %p138, %s15, 1
        %s140 = smul.addr %s139, 8
        %s141 = scalar_lea.vmem %s0, %s140
        %p142 = pneg %p36
        %p143 = pneg %p33
        %p144 = pneg %p57
        %p145 = pneg %p54
        %p146 = pneg %p78
        %p147 = pneg %p75
        %p148 = pneg %p99
        %p149 = pneg %p96
        %p150 = scmp.lt.s32.totalorder %s15, 1
        %s151 = scalar_select %p150, %s15, 1
        %s152 = smul.addr %s151, 8
        %s153 = scalar_lea.vmem %s0, %s152
        %p154 = scmp.eq.s32.totalorder %s15, 0
        // Predicated region
        $region33: #{tpu_custom_call.1} parent=31 // pred_check
          %p155 = pneg %p154
        $region34: #{tpu_custom_call.1} parent=31 // pred_check_branch
          %157 = sbr.rel (%p155) target = $region36
        $region35: #{tpu_custom_call.1} parent=31 // pred_region
          %158 = vst [vmem:[#allocation2] sm:$0xff] 0.0
        $region36: #{tpu_custom_call.1} parent=31 // pred_fallthru
          _
        %v159 = vld [vmem:[%s153] sm:$0xff]
        %v160 = vld [vmem:[%s1] sm:$0x1]
        %162 = vset.pattern.permute.xlu0 0
        %163 = vperm.xlu0 %162, %v159
        %v164 = vpop.permute.xlu0 %163
        %v167 = vperm.slane %v160, 0
        %v169 = vmul.f32 %v164, %v167
        %v170 = vld [vmem:[%s2] sm:$0x1]
        %v172 = vperm.slane %v170, 0
        %v174 = vadd.f32 %v169, %v172
        %v175 = vmax.f32 %v174, 0.0
        %s176 = smul.u32 %s15, 8
        %v177 = vlaneseq
        %v178 = vshrl.u32 %v177, 7
        %v179 = vstv %s176
        %v180 = vadd.s32 %v179, %v178
        %vm181 = vcmp.lt.s32.totalorder %v180, 10
        %v182 = vsel %vm181, 1, 0
        %vm183 = vcmp.eq.s32.totalorder %v182, 1
        %v184 = vsel %vm183, %v175, 0.0
        %v185 = vrot.slane %v184, 4
        %v186 = vadd.f32 %v184, %v185
        %v187 = vrot.slane %v186, 2
        %v188 = vadd.f32 %v186, %v187
        %v189 = vrot.slane %v188, 1
        %v190 = vadd.f32 %v188, %v189
        %v191 = vmul.f32 %v184, %v184
        %v192 = vrot.slane %v191, 4
        %v193 = vadd.f32 %v191, %v192
        %v194 = vrot.slane %v193, 2
        %v195 = vadd.f32 %v193, %v194
        %v196 = vrot.slane %v195, 1
        %v197 = vadd.f32 %v195, %v196
        %vm198 = vcmask 1040384
        %v199 = vsel %vm198, %v190, %v197
        %vm200 = vcmask 1041408
        %v201 = vsel %vm200, %v199, 0.0
        %v202 = vld [vmem:[#allocation2] sm:$0xff]
        %v203 = vadd.f32 %v202, %v201
        %204 = vst [vmem:[#allocation2] sm:$0xff] %v203
        // Predicated region
        $region37: #{tpu_custom_call.1} parent=31 // pred_check
          %p205 = pneg %p96
        $region38: #{tpu_custom_call.1} parent=31 // pred_check_branch
          %207 = sbr.rel (%p205) target = $region40
        $region39: #{tpu_custom_call.1} parent=31 // pred_region
          %209 = vsyncadd [#allocation3], 0
          %s211 = sshll.u32 [#allocation2], 4
          %s212 = int_to_ptr.vmem [resolvable:$true] %s211
          %s213 = sshll.u32 %s3, 4
          %s214 = int_to_ptr.hbm [resolvable:$true] %s213
          %216 = dma.vmem_to_hbm [thread:$0]  %s212, 128, %s214, [#allocation3]
        $region40: #{tpu_custom_call.1} parent=31 // pred_fallthru
          _
        // Predicated region
        $region41: #{tpu_custom_call.1} parent=31 // pred_check
          %p217 = pneg %p96
        $region42: #{tpu_custom_call.1} parent=31 // pred_check_branch
          %219 = sbr.rel (%p217) target = $region44
        $region43: #{tpu_custom_call.1} parent=31 // pred_region
          %221 = dma.done [#allocation3], 128
        $region44: #{tpu_custom_call.1} parent=31 // pred_fallthru
          _
      $region32: #{tpu_custom_call.1} parent=5 // pred_fallthru
        _
      %p222 = scmp.le.s32.totalorder 2, %s10
      // Predicated region
      $region45: #{tpu_custom_call.1} parent=5 // pred_check
        %p223 = pneg %p222
      $region46: #{tpu_custom_call.1} parent=5 // pred_check_branch
        %225 = sbr.rel (%p223) target = $region48
      $region47: #{tpu_custom_call.1} parent=5 // pred_region
        %s226 = ssub.s32 %s10, 2
      $region48: #{tpu_custom_call.1} parent=5 // pred_fallthru
        _
    $region6: #{tpu_custom_call.1} parent=1 // loop_footer
      %s14 = sadd.s32 1, %s10
    $region7: #{tpu_custom_call.1} parent=1 // loop_footer_branch
      %9 = sbr.rel target = $region3
    $region8: #{tpu_custom_call.1} parent=1 // loop_exit
      _
    %227 = vsyncpa [#allocation3], 1
    %s228 = scalar_lea.sflag [#allocation3], 1
    %229 = vsyncpa %s228, 1

</llo_original>
